<compile_context>
chip_gen: v6e
topology: v6e:2x2x1
jax: 0.10.0
libtpu: 0.0.40
codegen_flags: <defaults>
</compile_context>

<pallas_src>
import jax
import jax.numpy as jnp
from jax.experimental import pallas as pl
from jax.experimental.pallas import tpu as pltpu

HIDDEN = 64          # logical hidden width of the PyTorch module
HIDDEN_PAD = 128     # lane-dense padded hidden width
OUT_PAD = 128        # lane-dense padded output width
MAX_TILE_B = 2048    # row-tile cap (~1.3 MiB double-buffered per input tile)


def _round_up(x, m):
    return ((x + m - 1) // m) * m


def _choose_tile(batch):
    """Adaptive batch tile: whole batch for tiny inputs, else an even >=2 grid."""
    padded = _round_up(batch, 128)
    if padded <= 128:
        return padded                      # one grid step covers everything
    # Even grid (>= 2) so v7x's 2 TCs split the "parallel" batch axis; the
    # extra step costs ~0.35 us on single-TC chips (noise for this kernel).
    return min(MAX_TILE_B, _round_up(pl.cdiv(padded, 2), 128))


def mlp_kernel(x_ref, w1_ref, w23_ref, w4_ref, b_ref, o_ref):
    b = b_ref[...]                                            # (4, 128) f32
    # fc1 + relu  (bf16 MXU operands, f32 accumulate, f32 VPU elementwise)
    h = jnp.dot(x_ref[...].astype(jnp.bfloat16), w1_ref[...],
                preferred_element_type=jnp.float32)
    h = jnp.maximum(h + b[0], 0.0)
    # fc2 + relu
    h = jnp.dot(h.astype(jnp.bfloat16), w23_ref[0],
                preferred_element_type=jnp.float32)
    h = jnp.maximum(h + b[1], 0.0)
    # fc3 + relu
    h = jnp.dot(h.astype(jnp.bfloat16), w23_ref[1],
                preferred_element_type=jnp.float32)
    h = jnp.maximum(h + b[2], 0.0)
    # fc4 (no activation); lane-dense 128-wide bf16 store (halved writeback)
    h = jnp.dot(h.astype(jnp.bfloat16), w4_ref[...],
                preferred_element_type=jnp.float32)
    o_ref[...] = (h + b[3]).astype(o_ref.dtype)


def simple_policy_forward(x, padded_params, out_size, tile_b=None):
    """x: [batch, input_size] f32.  padded_params: lane-padded packed params."""
    batch, in_size = x.shape
    h_pad = padded_params["w1"].shape[1]
    out_pad = padded_params["w4"].shape[1]
    assert out_pad == h_pad, "bias packing assumes out_pad == hidden_pad"

    if tile_b is None:
        tile_b = _choose_tile(batch)
    n_tiles = pl.cdiv(batch, tile_b)
    padded_batch = n_tiles * tile_b
    if padded_batch != batch:
        x = jnp.pad(x, ((0, padded_batch - batch), (0, 0)))

    # Weights/biases: same block every grid step -> stay VMEM-resident.
    def resident(shape):
        return pl.BlockSpec(shape, lambda i, _n=len(shape): (0,) * _n)

    in_specs = [
        pl.BlockSpec((tile_b, in_size), lambda i: (i, 0)),  # x: blocked on batch
        resident((in_size, h_pad)),                         # fc1 weight
        resident((2, h_pad, h_pad)),                        # fc2/fc3 weights
        resident((h_pad, out_pad)),                         # fc4 weight
        resident((4, h_pad)),                               # packed biases
    ]

    out = pl.pallas_call(
        mlp_kernel,
        out_shape=jax.ShapeDtypeStruct((padded_batch, out_pad), jnp.bfloat16),
        grid=(n_tiles,),
        in_specs=in_specs,
        out_specs=pl.BlockSpec((tile_b, out_pad), lambda i: (i, 0)),
        compiler_params=pltpu.CompilerParams(
            dimension_semantics=("parallel",)),   # v7x: 2 TCs split batch tiles
    )(x, padded_params["w1"], padded_params["w23"],
      padded_params["w4"], padded_params["b"])

    # Slice off the padded rows/lanes; cast back to f32 for module parity.
    return out[:batch, :out_size].astype(jnp.float32)


def init_params(input_size, output_size, hidden=HIDDEN, seed=0):
    """Deterministic synthetic init (uniform like torch.nn.Linear).

    Weights stored [in, out] (transposed from torch's [out, in]); biases [1, out].
    """
    key = jax.random.PRNGKey(seed)
    dims = [(input_size, hidden), (hidden, hidden), (hidden, hidden),
            (hidden, output_size)]
    params = {}
    for i, (fan_in, fan_out) in enumerate(dims, start=1):
        key, kw, kb = jax.random.split(key, 3)
        bound = 1.0 / (fan_in ** 0.5)
        params[f"w{i}"] = jax.random.uniform(
            kw, (fan_in, fan_out), jnp.float32, -bound, bound)
        params[f"b{i}"] = jax.random.uniform(
            kb, (1, fan_out), jnp.float32, -bound, bound)
    return params


def pad_params(params, hidden_pad=HIDDEN_PAD, out_pad=OUT_PAD):
    """Zero-pad hidden/output lanes to 128, pack biases / fc2+fc3 weights.

    Weights -> bf16 (MXU fast path); biases stay f32 (f32 VPU bias+relu).
    """
    def pad2(a, rows, cols):
        return jnp.pad(a, ((0, rows - a.shape[0]), (0, cols - a.shape[1])))

    in_size = params["w1"].shape[0]
    w1 = pad2(params["w1"], in_size, hidden_pad).astype(jnp.bfloat16)
    w2 = pad2(params["w2"], hidden_pad, hidden_pad).astype(jnp.bfloat16)
    w3 = pad2(params["w3"], hidden_pad, hidden_pad).astype(jnp.bfloat16)
    w4 = pad2(params["w4"], hidden_pad, out_pad).astype(jnp.bfloat16)
    b = jnp.concatenate([
        pad2(params["b1"], 1, hidden_pad),
        pad2(params["b2"], 1, hidden_pad),
        pad2(params["b3"], 1, hidden_pad),
        pad2(params["b4"], 1, out_pad),
    ], axis=0)                                   # (4, 128) f32
    return {"w1": w1, "w23": jnp.stack([w2, w3]), "w4": w4, "b": b}


def reference_forward(x, padded_params, out_size):
    """Pure-JAX reference mirroring the kernel's math (bf16 operands, f32 acc)."""
    b = padded_params["b"]
    h = jnp.dot(x.astype(jnp.bfloat16), padded_params["w1"],
                preferred_element_type=jnp.float32)
    h = jnp.maximum(h + b[0], 0.0)
    for layer in range(2):
        h = jnp.dot(h.astype(jnp.bfloat16), padded_params["w23"][layer],
                    preferred_element_type=jnp.float32)
        h = jnp.maximum(h + b[layer + 1], 0.0)
    h = jnp.dot(h.astype(jnp.bfloat16), padded_params["w4"],
                preferred_element_type=jnp.float32)
    h = (h + b[3]).astype(jnp.bfloat16)
    return h[:, :out_size].astype(jnp.float32)


if __name__ == "__main__":
    input_size = 32
    output_size = 8
    batch = 200   # exercises batch padding (200 -> 256) and a 2-tile parallel grid

    params = init_params(input_size, output_size)
    padded = pad_params(params)

    key = jax.random.PRNGKey(0)
    x = jax.random.normal(key, (batch, input_size), jnp.float32)

    out = simple_policy_forward(x, padded, output_size)
    jax.block_until_ready(out)

    ref = reference_forward(x, padded, output_size)
    assert out.shape == (batch, output_size)
    assert jnp.allclose(out, ref, atol=1e-2, rtol=1e-2), (
        float(jnp.max(jnp.abs(out - ref))))

    print("KERNEL_OK")
</pallas_src>

<mosaic_0001>
module attributes {stable_mosaic.version = 11 : i64} {
  func.func @mlp_kernel(%arg0: i32, %arg1: memref<128x32xf32, #tpu.memory_space<vmem>>, %arg2: memref<32x128xbf16, #tpu.memory_space<vmem>>, %arg3: memref<2x128x128xbf16, #tpu.memory_space<vmem>>, %arg4: memref<128x128xbf16, #tpu.memory_space<vmem>>, %arg5: memref<4x128xf32, #tpu.memory_space<vmem>>, %arg6: memref<128x128xbf16, #tpu.memory_space<vmem>>) attributes {dimension_semantics = [#tpu.dimension_semantics<parallel>], iteration_bounds = array<i64: 2>, scalar_prefetch = 0 : i64, scratch_operands = 0 : i64, tpu.core_type = #tpu.core_type<tc>, window_params = [{transform_indices = @transform_0, window_bounds = array<i64: 128, 32>}, {pipeline_mode = #tpu.pipeline_mode<synchronous>, transform_indices = @transform_1, window_bounds = array<i64: 32, 128>}, {pipeline_mode = #tpu.pipeline_mode<synchronous>, transform_indices = @transform_2, window_bounds = array<i64: 2, 128, 128>}, {pipeline_mode = #tpu.pipeline_mode<synchronous>, transform_indices = @transform_3, window_bounds = array<i64: 128, 128>}, {pipeline_mode = #tpu.pipeline_mode<synchronous>, transform_indices = @transform_4, window_bounds = array<i64: 4, 128>}, {transform_indices = @transform_5, window_bounds = array<i64: 128, 128>}]} {
    %c0 = arith.constant 0 : index
    %c0_0 = arith.constant 0 : index
    %0 = vector.load %arg5[%c0, %c0_0] : memref<4x128xf32, #tpu.memory_space<vmem>>, vector<4x128xf32>
    %c0_1 = arith.constant 0 : index
    %c0_2 = arith.constant 0 : index
    %1 = vector.load %arg1[%c0_1, %c0_2] : memref<128x32xf32, #tpu.memory_space<vmem>>, vector<128x32xf32>
    %2 = arith.truncf %1 : vector<128x32xf32> to vector<128x32xbf16>
    %c0_3 = arith.constant 0 : index
    %c0_4 = arith.constant 0 : index
    %3 = vector.load %arg2[%c0_3, %c0_4] : memref<32x128xbf16, #tpu.memory_space<vmem>>, vector<32x128xbf16>
    %cst = arith.constant dense<0.000000e+00> : vector<128x128xf32>
    %4 = tpu.matmul %2, %3, %cst {dimension_numbers = #tpu.dot_dimension_numbers<[1], [0], [0], [1], [0, 0, 1, 1], [], []>} : vector<128x32xbf16>, vector<32x128xbf16>, vector<128x128xf32> -> vector<128x128xf32>
    %5 = vector.extract_strided_slice %0 {offsets = [0, 0], sizes = [1, 128], strides = [1, 1]} : vector<4x128xf32> to vector<1x128xf32>
    %6 = vector.shape_cast %5 : vector<1x128xf32> to vector<128xf32>
    %7 = vector.shape_cast %6 : vector<128xf32> to vector<1x128xf32>
    %8 = vector.broadcast %7 : vector<1x128xf32> to vector<128x128xf32>
    %9 = arith.addf %4, %8 : vector<128x128xf32>
    %cst_5 = arith.constant 0.000000e+00 : f32
    %10 = vector.broadcast %cst_5 : f32 to vector<128x128xf32>
    %11 = arith.maximumf %9, %10 : vector<128x128xf32>
    %12 = arith.truncf %11 : vector<128x128xf32> to vector<128x128xbf16>
    %c0_6 = arith.constant 0 : index
    %c0_7 = arith.constant 0 : index
    %c0_8 = arith.constant 0 : index
    %13 = vector.load %arg3[%c0_6, %c0_7, %c0_8] : memref<2x128x128xbf16, #tpu.memory_space<vmem>>, vector<1x128x128xbf16>
    %14 = vector.shape_cast %13 : vector<1x128x128xbf16> to vector<128x128xbf16>
    %cst_9 = arith.constant dense<0.000000e+00> : vector<128x128xf32>
    %15 = tpu.matmul %12, %14, %cst_9 {dimension_numbers = #tpu.dot_dimension_numbers<[1], [0], [0], [1], [0, 0, 1, 1], [], []>} : vector<128x128xbf16>, vector<128x128xbf16>, vector<128x128xf32> -> vector<128x128xf32>
    %16 = vector.extract_strided_slice %0 {offsets = [1, 0], sizes = [1, 128], strides = [1, 1]} : vector<4x128xf32> to vector<1x128xf32>
    %17 = vector.shape_cast %16 : vector<1x128xf32> to vector<128xf32>
    %18 = vector.shape_cast %17 : vector<128xf32> to vector<1x128xf32>
    %19 = vector.broadcast %18 : vector<1x128xf32> to vector<128x128xf32>
    %20 = arith.addf %15, %19 : vector<128x128xf32>
    %cst_10 = arith.constant 0.000000e+00 : f32
    %21 = vector.broadcast %cst_10 : f32 to vector<128x128xf32>
    %22 = arith.maximumf %20, %21 : vector<128x128xf32>
    %23 = arith.truncf %22 : vector<128x128xf32> to vector<128x128xbf16>
    %c1 = arith.constant 1 : index
    %c0_11 = arith.constant 0 : index
    %c0_12 = arith.constant 0 : index
    %24 = vector.load %arg3[%c1, %c0_11, %c0_12] : memref<2x128x128xbf16, #tpu.memory_space<vmem>>, vector<1x128x128xbf16>
    %25 = vector.shape_cast %24 : vector<1x128x128xbf16> to vector<128x128xbf16>
    %cst_13 = arith.constant dense<0.000000e+00> : vector<128x128xf32>
    %26 = tpu.matmul %23, %25, %cst_13 {dimension_numbers = #tpu.dot_dimension_numbers<[1], [0], [0], [1], [0, 0, 1, 1], [], []>} : vector<128x128xbf16>, vector<128x128xbf16>, vector<128x128xf32> -> vector<128x128xf32>
    %27 = vector.extract_strided_slice %0 {offsets = [2, 0], sizes = [1, 128], strides = [1, 1]} : vector<4x128xf32> to vector<1x128xf32>
    %28 = vector.shape_cast %27 : vector<1x128xf32> to vector<128xf32>
    %29 = vector.shape_cast %28 : vector<128xf32> to vector<1x128xf32>
    %30 = vector.broadcast %29 : vector<1x128xf32> to vector<128x128xf32>
    %31 = arith.addf %26, %30 : vector<128x128xf32>
    %cst_14 = arith.constant 0.000000e+00 : f32
    %32 = vector.broadcast %cst_14 : f32 to vector<128x128xf32>
    %33 = arith.maximumf %31, %32 : vector<128x128xf32>
    %34 = arith.truncf %33 : vector<128x128xf32> to vector<128x128xbf16>
    %c0_15 = arith.constant 0 : index
    %c0_16 = arith.constant 0 : index
    %35 = vector.load %arg4[%c0_15, %c0_16] : memref<128x128xbf16, #tpu.memory_space<vmem>>, vector<128x128xbf16>
    %cst_17 = arith.constant dense<0.000000e+00> : vector<128x128xf32>
    %36 = tpu.matmul %34, %35, %cst_17 {dimension_numbers = #tpu.dot_dimension_numbers<[1], [0], [0], [1], [0, 0, 1, 1], [], []>} : vector<128x128xbf16>, vector<128x128xbf16>, vector<128x128xf32> -> vector<128x128xf32>
    %37 = vector.extract_strided_slice %0 {offsets = [3, 0], sizes = [1, 128], strides = [1, 1]} : vector<4x128xf32> to vector<1x128xf32>
    %38 = vector.shape_cast %37 : vector<1x128xf32> to vector<128xf32>
    %39 = vector.shape_cast %38 : vector<128xf32> to vector<1x128xf32>
    %40 = vector.broadcast %39 : vector<1x128xf32> to vector<128x128xf32>
    %41 = arith.addf %36, %40 : vector<128x128xf32>
    %42 = arith.truncf %41 : vector<128x128xf32> to vector<128x128xbf16>
    %c0_18 = arith.constant 0 : index
    %c0_19 = arith.constant 0 : index
    %43 = vector.load %arg6[%c0_18, %c0_19] : memref<128x128xbf16, #tpu.memory_space<vmem>>, vector<128x128xbf16>
    tpu.vector_store %arg6[%c0_18, %c0_19], %42 {strides = array<i32>} : memref<128x128xbf16, #tpu.memory_space<vmem>>, vector<128x128xbf16>,
    return
  }
  func.func @transform_0(%arg0: i32) -> (i32, i32) {
    %c0_i32 = arith.constant 0 : i32
    %c0_i32_0 = arith.constant 0 : i32
    return %arg0, %c0_i32 : i32, i32
  }
  func.func @transform_1(%arg0: i32) -> (i32, i32) {
    %c0_i32 = arith.constant 0 : i32
    %c0_i32_0 = arith.constant 0 : i32
    %c0_i32_1 = arith.constant 0 : i32
    return %c0_i32, %c0_i32_0 : i32, i32
  }
  func.func @transform_2(%arg0: i32) -> (i32, i32, i32) {
    %c0_i32 = arith.constant 0 : i32
    %c0_i32_0 = arith.constant 0 : i32
    %c0_i32_1 = arith.constant 0 : i32
    %c0_i32_2 = arith.constant 0 : i32
    return %c0_i32, %c0_i32_0, %c0_i32_1 : i32, i32, i32
  }
  func.func @transform_3(%arg0: i32) -> (i32, i32) {
    %c0_i32 = arith.constant 0 : i32
    %c0_i32_0 = arith.constant 0 : i32
    %c0_i32_1 = arith.constant 0 : i32
    return %c0_i32, %c0_i32_0 : i32, i32
  }
  func.func @transform_4(%arg0: i32) -> (i32, i32) {
    %c0_i32 = arith.constant 0 : i32
    %c0_i32_0 = arith.constant 0 : i32
    %c0_i32_1 = arith.constant 0 : i32
    return %c0_i32, %c0_i32_0 : i32, i32
  }
  func.func @transform_5(%arg0: i32) -> (i32, i32) {
    %c0_i32 = arith.constant 0 : i32
    %c0_i32_0 = arith.constant 0 : i32
    return %arg0, %c0_i32 : i32, i32
  }
}

</mosaic_0001>

<llo_original>
// kernel: tpu_custom_call.1
$region0: #{tpu_custom_call.1}
  #allocation0 [shape = 'u32[]', space=smem, size = 0x4, offset = 0x4, fixed_abs, tag = 'smem constant byte address 0x4 - core index']
  #allocation1 [shape = 'u32[144,128]{1,0:T(1,128)}', space=vmem, size = 0x12000, scoped, tag = 'internal scratch']
  %s0 = inlined_call_operand.vmem [shape: f32[256,32], index: 0, kind: input, shape index: {}]
  %s1 = inlined_call_operand.vmem [shape: bf16[32,128], index: 1, kind: input, shape index: {}]
  %s2 = inlined_call_operand.vmem [shape: bf16[2,128,128], index: 2, kind: input, shape index: {}]
  %s3 = inlined_call_operand.vmem [shape: bf16[128,128], index: 3, kind: input, shape index: {}]
  %s4 = inlined_call_operand.vmem [shape: f32[4,128], index: 4, kind: input, shape index: {}]
  %s5 = inlined_call_operand.hbm [shape: bf16[256,128], index: 5, kind: output, shape index: {}]
  %s6 = sld [smem:[#allocation0]]
  $region53: #{tpu_custom_call.1} parent=0
    _
  %s8 = ssub.s32 1, %s6
  %s9 = scalar_select 0, %s8, %s6
  $region1: #{tpu_custom_call.1} parent=0
    #allocation2 [shape = 'u8[65536]{0}', space=vmem, size = 0x10000, scoped, tag = 'output window, operand 0']
    #allocation3 [shape = 's32[2]{0}', space=sflag, size = 0x8, scoped, tag = 'scoped memory for tpu_custom_call.1']
    %10 = vsyncpa [#allocation3], 0
    %s11 = scalar_lea.sflag [#allocation3], 1
    %12 = vsyncpa %s11, 0
    loop: start=0, step=1, limit=4
    $region2: #{tpu_custom_call.1} parent=1 // loop_pre_header
      _
    $region3: #{tpu_custom_call.1} parent=1 // loop_header
      %s14 = sphi 0, %s18
      %p15 = scmp.ge.s32.totalorder %s14, 4
      %s24 = sphi 0, %s26
      %s27 = sphi 0, %s24
      %s28 = sphi 0, %s27
      %s44 = sphi 0, %s28
      %s48 = sphi 0, %s48
      %s50 = sphi 0, %s48
      %s51 = sphi 0, %s50
      %s65 = sphi 0, %s51
      %s69 = sphi 0, %s69
      %s71 = sphi 0, %s69
      %s72 = sphi 0, %s71
      %s86 = sphi 0, %s72
      %s90 = sphi 0, %s90
      %s92 = sphi 0, %s90
      %s93 = sphi 0, %s92
      %s107 = sphi 0, %s93
      %s111 = sphi 0, %s111
      %s113 = sphi 0, %s111
      %s114 = sphi 0, %s113
      %s128 = sphi 0, %s114
      %s134 = sphi 0, %s136
      %s137 = sphi 0, %s134
      %s138 = sphi 0, %s137
      %s154 = sphi 0, %s138
    $region4: #{tpu_custom_call.1} parent=1 // loop_header_branch
      %17 = sbr.rel (%p15) target = $region8
    $region5: #{tpu_custom_call.1} parent=1 // loop_body
      %s19 = ssub.s32 %s14, 1
      %s20 = ssub.s32 %s14, 2
      %s21 = sadd.s32 %s14, 1
      %s22 = ssub.s32 %s14, %s21
      %p23 = scmp.eq.s32.totalorder %s22, 0
      %s25 = sadd.s32 %s24, 1
      %s26 = scalar_select %p23, %s24, %s25
      %p29 = pneg %p23
      %p30 = scmp.eq.s32.totalorder %s14, 1
      %p31 = por %p29, %p30
      %p32 = scmp.ne.s32.totalorder %s24, %s27
      %p33 = scmp.eq.s32.totalorder %s14, 0
      %p34 = por %p32, %p33
      %p35 = scmp.ne.s32.totalorder %s24, %s27
      %p36 = scmp.eq.s32.totalorder %s19, 1
      %p37 = por %p35, %p36
      %p38 = scmp.ne.s32.totalorder %s27, %s28
      %p39 = scmp.eq.s32.totalorder %s19, 0
      %p40 = por %p38, %p39
      %p41 = scmp.ne.s32.totalorder %s27, %s28
      %p42 = scmp.eq.s32.totalorder %s20, 1
      %p43 = por %p41, %p42
      %p45 = scmp.ne.s32.totalorder %s28, %s44
      %p46 = scmp.eq.s32.totalorder %s20, 0
      %p47 = por %p45, %p46
      %s49 = sadd.s32 %s48, 1
      %p52 = scmp.eq.s32.totalorder %s14, 1
      %p53 = scmp.ne.s32.totalorder %s48, %s50
      %p54 = scmp.eq.s32.totalorder %s14, 0
      %p55 = por %p53, %p54
      %p56 = scmp.ne.s32.totalorder %s48, %s50
      %p57 = scmp.eq.s32.totalorder %s19, 1
      %p58 = por %p56, %p57
      %p59 = scmp.ne.s32.totalorder %s50, %s51
      %p60 = scmp.eq.s32.totalorder %s19, 0
      %p61 = por %p59, %p60
      %p62 = scmp.ne.s32.totalorder %s50, %s51
      %p63 = scmp.eq.s32.totalorder %s20, 1
      %p64 = por %p62, %p63
      %p66 = scmp.ne.s32.totalorder %s51, %s65
      %p67 = scmp.eq.s32.totalorder %s20, 0
      %p68 = por %p66, %p67
      %s70 = sadd.s32 %s69, 1
      %p73 = scmp.eq.s32.totalorder %s14, 1
      %p74 = scmp.ne.s32.totalorder %s69, %s71
      %p75 = scmp.eq.s32.totalorder %s14, 0
      %p76 = por %p74, %p75
      %p77 = scmp.ne.s32.totalorder %s69, %s71
      %p78 = scmp.eq.s32.totalorder %s19, 1
      %p79 = por %p77, %p78
      %p80 = scmp.ne.s32.totalorder %s71, %s72
      %p81 = scmp.eq.s32.totalorder %s19, 0
      %p82 = por %p80, %p81
      %p83 = scmp.ne.s32.totalorder %s71, %s72
      %p84 = scmp.eq.s32.totalorder %s20, 1
      %p85 = por %p83, %p84
      %p87 = scmp.ne.s32.totalorder %s72, %s86
      %p88 = scmp.eq.s32.totalorder %s20, 0
      %p89 = por %p87, %p88
      %s91 = sadd.s32 %s90, 1
      %p94 = scmp.eq.s32.totalorder %s14, 1
      %p95 = scmp.ne.s32.totalorder %s90, %s92
      %p96 = scmp.eq.s32.totalorder %s14, 0
      %p97 = por %p95, %p96
      %p98 = scmp.ne.s32.totalorder %s90, %s92
      %p99 = scmp.eq.s32.totalorder %s19, 1
      %p100 = por %p98, %p99
      %p101 = scmp.ne.s32.totalorder %s92, %s93
      %p102 = scmp.eq.s32.totalorder %s19, 0
      %p103 = por %p101, %p102
      %p104 = scmp.ne.s32.totalorder %s92, %s93
      %p105 = scmp.eq.s32.totalorder %s20, 1
      %p106 = por %p104, %p105
      %p108 = scmp.ne.s32.totalorder %s93, %s107
      %p109 = scmp.eq.s32.totalorder %s20, 0
      %p110 = por %p108, %p109
      %s112 = sadd.s32 %s111, 1
      %p115 = scmp.eq.s32.totalorder %s14, 1
      %p116 = scmp.ne.s32.totalorder %s111, %s113
      %p117 = scmp.eq.s32.totalorder %s14, 0
      %p118 = por %p116, %p117
      %p119 = scmp.ne.s32.totalorder %s111, %s113
      %p120 = scmp.eq.s32.totalorder %s19, 1
      %p121 = por %p119, %p120
      %p122 = scmp.ne.s32.totalorder %s113, %s114
      %p123 = scmp.eq.s32.totalorder %s19, 0
      %p124 = por %p122, %p123
      %p125 = scmp.ne.s32.totalorder %s113, %s114
      %p126 = scmp.eq.s32.totalorder %s20, 1
      %p127 = por %p125, %p126
      %p129 = scmp.ne.s32.totalorder %s114, %s128
      %p130 = scmp.eq.s32.totalorder %s20, 0
      %p131 = por %p129, %p130
      %s132 = ssub.s32 %s14, %s21
      %p133 = scmp.eq.s32.totalorder %s132, 0
      %s135 = sadd.s32 %s134, 1
      %s136 = scalar_select %p133, %s134, %s135
      %p139 = pneg %p133
      %p140 = scmp.eq.s32.totalorder %s14, 1
      %p141 = por %p139, %p140
      %p142 = scmp.ne.s32.totalorder %s134, %s137
      %p143 = scmp.eq.s32.totalorder %s14, 0
      %p144 = por %p142, %p143
      %p145 = scmp.ne.s32.totalorder %s134, %s137
      %p146 = scmp.eq.s32.totalorder %s19, 1
      %p147 = por %p145, %p146
      %p148 = scmp.ne.s32.totalorder %s137, %s138
      %p149 = scmp.eq.s32.totalorder %s19, 0
      %p150 = por %p148, %p149
      %p151 = scmp.ne.s32.totalorder %s137, %s138
      %p152 = scmp.eq.s32.totalorder %s20, 1
      %p153 = por %p151, %p152
      %p155 = scmp.ne.s32.totalorder %s138, %s154
      %p156 = scmp.eq.s32.totalorder %s20, 0
      %p157 = por %p155, %p156
      %p158 = scmp.le.s32.totalorder 1, %s14
      %p159 = scmp.lt.s32.totalorder %s14, 3
      %p160 = pnand %p158, %p159
      %p161 = pneg %p160
      // Predicated region
      $region9: #{tpu_custom_call.1} parent=5 // pred_check
        _
      $region10: #{tpu_custom_call.1} parent=5 // pred_check_branch
        %163 = sbr.rel (%p160) target = $region12
      $region11: #{tpu_custom_call.1} parent=5 // pred_region
        %s164 = ssub.s32 %s14, 1
        // Predicated region
        $region13: #{tpu_custom_call.1} parent=11 // pred_check
          %p165 = pneg %p61
        $region14: #{tpu_custom_call.1} parent=11 // pred_check_branch
          %167 = sbr.rel (%p165) target = $region16
        $region15: #{tpu_custom_call.1} parent=11 // pred_region
          _
        $region16: #{tpu_custom_call.1} parent=11 // pred_fallthru
          _
        // Predicated region
        $region17: #{tpu_custom_call.1} parent=11 // pred_check
          %p168 = pneg %p82
        $region18: #{tpu_custom_call.1} parent=11 // pred_check_branch
          %170 = sbr.rel (%p168) target = $region20
        $region19: #{tpu_custom_call.1} parent=11 // pred_region
          _
        $region20: #{tpu_custom_call.1} parent=11 // pred_fallthru
          _
        // Predicated region
        $region21: #{tpu_custom_call.1} parent=11 // pred_check
          %p171 = pneg %p103
        $region22: #{tpu_custom_call.1} parent=11 // pred_check_branch
          %173 = sbr.rel (%p171) target = $region24
        $region23: #{tpu_custom_call.1} parent=11 // pred_region
          _
        $region24: #{tpu_custom_call.1} parent=11 // pred_fallthru
          _
        // Predicated region
        $region25: #{tpu_custom_call.1} parent=11 // pred_check
          %p174 = pneg %p124
        $region26: #{tpu_custom_call.1} parent=11 // pred_check_branch
          %176 = sbr.rel (%p174) target = $region28
        $region27: #{tpu_custom_call.1} parent=11 // pred_region
          _
        $region28: #{tpu_custom_call.1} parent=11 // pred_fallthru
          _
      $region12: #{tpu_custom_call.1} parent=5 // pred_fallthru
        _
      %p177 = scmp.lt.s32.totalorder %s14, 2
      // Predicated region
      $region29: #{tpu_custom_call.1} parent=5 // pred_check
        %p178 = pneg %p177
      $region30: #{tpu_custom_call.1} parent=5 // pred_check_branch
        %180 = sbr.rel (%p178) target = $region32
      $region31: #{tpu_custom_call.1} parent=5 // pred_region
        // Predicated region
        $region33: #{tpu_custom_call.1} parent=31 // pred_check
          %p181 = pneg %p34
        $region34: #{tpu_custom_call.1} parent=31 // pred_check_branch
          %183 = sbr.rel (%p181) target = $region36
        $region35: #{tpu_custom_call.1} parent=31 // pred_region
          %s184 = smul.u32 16, %s14
          %p185 = scmp.lt.s32.totalorder %s184, 31
          %s186 = scalar_select %p185, %s184, 31
          %s187 = smul.addr %s186, 8
          %s188 = scalar_lea.vmem %s0, %s187
          %s189 = smul.u32 16, %s14
        $region36: #{tpu_custom_call.1} parent=31 // pred_fallthru
          _
      $region32: #{tpu_custom_call.1} parent=5 // pred_fallthru
        _
      %p190 = scmp.le.s32.totalorder 1, %s14
      %p191 = scmp.lt.s32.totalorder %s14, 3
      %p192 = pnand %p190, %p191
      %p193 = pneg %p192
      // Predicated region
      $region37: #{tpu_custom_call.1} parent=5 // pred_check
        _
      $region38: #{tpu_custom_call.1} parent=5 // pred_check_branch
        %195 = sbr.rel (%p192) target = $region40
      $region39: #{tpu_custom_call.1} parent=5 // pred_region
        %s196 = ssub.s32 %s14, 1
        %s197 = smul.u32 16, %s19
        %p198 = scmp.lt.s32.totalorder %s197, 31
        %s199 = scalar_select %p198, %s197, 31
        %s200 = smul.addr %s199, 8
        %s201 = scalar_lea.vmem %s0, %s200
        %p202 = pneg %p40
        %p203 = pneg %p37
        %p204 = pneg %p61
        %p205 = pneg %p58
        %p206 = pneg %p82
        %p207 = pneg %p79
        %p208 = pneg %p103
        %p209 = pneg %p100
        %p210 = pneg %p124
        %p211 = pneg %p121
        %p212 = pneg %p150
        %p213 = pneg %p147
        %s214 = sand.u32 %s137, 1
        %s215 = scalar_lea.sflag [#allocation3], %s214
        %s216 = sand.u32 %s137, 1
        %s217 = smul.addr %s216, 64
        %s218 = scalar_lea.vmem [#allocation2], %s217
        %s219 = smul.u32 16, %s19
        %p220 = scmp.lt.s32.totalorder %s219, 31
        %s221 = scalar_select %p220, %s219, 31
        %s222 = smul.addr %s221, 8
        %s223 = scalar_lea.vmem %s0, %s222
        %s224 = smul.u32 16, %s19
        %s225 = smul.u32 16, %s19
        %v227 = vld [vmem:[%s4] sm:$0xf]
        %v228 = vld [vmem:[%s223] sm:$0xff]
        %v229 = vld [vmem:[%s223 + $0x8] sm:$0xff]
        %v230 = vld [vmem:[%s223 + $0x10] sm:$0xff]
        %v231 = vld [vmem:[%s223 + $0x18] sm:$0xff]
        %v232 = vld [vmem:[%s223 + $0x20] sm:$0xff]
        %v233 = vld [vmem:[%s223 + $0x28] sm:$0xff]
        %v234 = vld [vmem:[%s223 + $0x30] sm:$0xff]
        %v235 = vld [vmem:[%s223 + $0x38] sm:$0xff]
        %v236 = vld [vmem:[%s223 + $0x40] sm:$0xff]
        %v237 = vld [vmem:[%s223 + $0x48] sm:$0xff]
        %v238 = vld [vmem:[%s223 + $0x50] sm:$0xff]
        %v239 = vld [vmem:[%s223 + $0x58] sm:$0xff]
        %v240 = vld [vmem:[%s223 + $0x60] sm:$0xff]
        %v241 = vld [vmem:[%s223 + $0x68] sm:$0xff]
        %v242 = vld [vmem:[%s223 + $0x70] sm:$0xff]
        %v243 = vld [vmem:[%s223 + $0x78] sm:$0xff]
        %v244 = vpack.c.bf16 %v229, %v228
        %v245 = vpack.c.bf16 %v231, %v230
        %v246 = vpack.c.bf16 %v233, %v232
        %v247 = vpack.c.bf16 %v235, %v234
        %v248 = vpack.c.bf16 %v237, %v236
        %v249 = vpack.c.bf16 %v239, %v238
        %v250 = vpack.c.bf16 %v241, %v240
        %v251 = vpack.c.bf16 %v243, %v242
        %v252 = vld [vmem:[%s1] sm:$0xf]
        %v253 = vld [vmem:[%s1 + $0x4] sm:$0xf]
        %v254 = vld [vmem:[%s1 + $0x8] sm:$0xf]
        %v255 = vld [vmem:[%s1 + $0xc] sm:$0xf]
        %v256 = vlaneseq
        %v257 = vshrl.u32 %v256, 7
        %v258 = vsub.s32 0, %v257
        %v259 = vrot.slane %v227, %v258
        %v264 = vunpack.c.l.b16 %v252
        %v265 = vunpack.c.l.b16 %v253
        %v266 = vunpack.c.l.b16 %v254
        %v267 = vunpack.c.l.b16 %v255
        %v268 = vpack.c.b16 %v265, %v264
        %v269 = vpack.c.b16 %v267, %v266
        %vm272 = vcmask 261120
        %v274 = vsel %vm272, %v244, 0
        %v277 = vsel %vm272, %v245, 0
        %v280 = vsel %vm272, %v246, 0
        %v283 = vsel %vm272, %v247, 0
        %v286 = vsel %vm272, %v248, 0
        %v289 = vsel %vm272, %v249, 0
        %v292 = vsel %vm272, %v250, 0
        %v295 = vsel %vm272, %v251, 0
        %297 = vmatprep.subr.bf16.mxu0 0
        %298 = vmatpush1.bf16.msra.mxu0 0
        %299 = vmatprep.subr.bf16.mxu0 0
        %300 = vmatpush1.bf16.msra.mxu0 0
        %301 = vmatprep.subr.bf16.mxu0 0
        %302 = vmatpush1.bf16.msra.mxu0 0
        %303 = vmatprep.subr.bf16.mxu0 0
        %304 = vmatpush1.bf16.msra.mxu0 0
        %305 = vmatprep.subr.bf16.mxu0 0
        %306 = vmatpush1.bf16.msra.mxu0 0
        %307 = vmatprep.subr.bf16.mxu0 0
        %308 = vmatpush1.bf16.msra.mxu0 0
        %309 = vmatprep.subr.bf16.mxu0 0
        %310 = vmatpush1.bf16.msra.mxu0 %v269
        %311 = vmatprep.subr.bf16.mxu0 0
        %312 = vmatpush1.bf16.msra.mxu0 %v268
        %313 = vmatprep.subr.bf16.mxu0 0
        %314 = vmatpush2.bf16.msra.mxu0 0
        %315 = vmatprep.subr.bf16.mxu0 0
        %316 = vmatpush2.bf16.msra.mxu0 0
        %317 = vmatprep.subr.bf16.mxu0 0
        %318 = vmatpush2.bf16.msra.mxu0 0
        %319 = vmatprep.subr.bf16.mxu0 0
        %320 = vmatpush2.bf16.msra.mxu0 0
        %321 = vmatprep.subr.bf16.mxu0 0
        %322 = vmatpush2.bf16.msra.mxu0 0
        %323 = vmatprep.subr.bf16.mxu0 0
        %324 = vmatpush2.bf16.msra.mxu0 0
        %325 = vmatprep.subr.bf16.mxu0 0
        %326 = vmatpush2.bf16.msra.mxu0 0
        %327 = vmatprep.subr.bf16.mxu0 0
        %328 = vmatpush2.bf16.msra.mxu0 0
        %329 = vmatprep.mubr.bf16.mxu0 0
        %330 = vmatmul.mubr.bf16.gmra.mxu0 %v274
        %v331 = vpop.f32.mrf.mxu0
        %v332 = vadd.f32 %v259, %v331
        %v333 = vpop.f32.mrf.mxu0
        %v334 = vpop.f32.mrf.mxu0
        %v335 = vadd.f32 %v259, %v334
        %v336 = vpop.f32.mrf.mxu0
        %337 = vmatprep.mubr.bf16.mxu0 0
        %338 = vmatmul.mubr.bf16.gmra.mxu0 %v277
        %v339 = vpop.f32.mrf.mxu0
        %v340 = vadd.f32 %v259, %v339
        %v341 = vpop.f32.mrf.mxu0
        %v342 = vpop.f32.mrf.mxu0
        %v343 = vadd.f32 %v259, %v342
        %v344 = vpop.f32.mrf.mxu0
        %345 = vmatprep.mubr.bf16.mxu0 0
        %346 = vmatmul.mubr.bf16.gmra.mxu0 %v280
        %v347 = vpop.f32.mrf.mxu0
        %v348 = vadd.f32 %v259, %v347
        %v349 = vpop.f32.mrf.mxu0
        %v350 = vpop.f32.mrf.mxu0
        %v351 = vadd.f32 %v259, %v350
        %v352 = vpop.f32.mrf.mxu0
        %353 = vmatprep.mubr.bf16.mxu0 0
        %354 = vmatmul.mubr.bf16.gmra.mxu0 %v283
        %v355 = vpop.f32.mrf.mxu0
        %v356 = vadd.f32 %v259, %v355
        %v357 = vpop.f32.mrf.mxu0
        %v358 = vpop.f32.mrf.mxu0
        %v359 = vadd.f32 %v259, %v358
        %v360 = vpop.f32.mrf.mxu0
        %361 = vmatprep.mubr.bf16.mxu0 0
        %362 = vmatmul.mubr.bf16.gmra.mxu0 %v286
        %v363 = vpop.f32.mrf.mxu0
        %v364 = vadd.f32 %v259, %v363
        %v365 = vpop.f32.mrf.mxu0
        %v366 = vpop.f32.mrf.mxu0
        %v367 = vadd.f32 %v259, %v366
        %v368 = vpop.f32.mrf.mxu0
        %369 = vmatprep.mubr.bf16.mxu0 0
        %370 = vmatmul.mubr.bf16.gmra.mxu0 %v289
        %v371 = vpop.f32.mrf.mxu0
        %v372 = vadd.f32 %v259, %v371
        %v373 = vpop.f32.mrf.mxu0
        %v374 = vpop.f32.mrf.mxu0
        %v375 = vadd.f32 %v259, %v374
        %v376 = vpop.f32.mrf.mxu0
        %377 = vmatprep.mubr.bf16.mxu0 0
        %378 = vmatmul.mubr.bf16.gmra.mxu0 %v292
        %v379 = vpop.f32.mrf.mxu0
        %v380 = vadd.f32 %v259, %v379
        %v381 = vpop.f32.mrf.mxu0
        %v382 = vpop.f32.mrf.mxu0
        %v383 = vadd.f32 %v259, %v382
        %v384 = vpop.f32.mrf.mxu0
        %385 = vmatprep.mubr.bf16.mxu0 0
        %386 = vmatmul.mubr.bf16.gmra.mxu0 %v295
        %v387 = vpop.f32.mrf.mxu0
        %v388 = vadd.f32 %v259, %v387
        %v389 = vpop.f32.mrf.mxu0
        %v390 = vpop.f32.mrf.mxu0
        %v391 = vadd.f32 %v259, %v390
        %v392 = vpop.f32.mrf.mxu0
        %393 = vdwg.mxu0
        %v394 = vmax.f32 %v332, 0.0
        %v395 = vmax.f32 %v335, 0.0
        %v396 = vmax.f32 %v340, 0.0
        %v397 = vmax.f32 %v343, 0.0
        %v398 = vmax.f32 %v348, 0.0
        %v399 = vmax.f32 %v351, 0.0
        %v400 = vmax.f32 %v356, 0.0
        %v401 = vmax.f32 %v359, 0.0
        %v402 = vmax.f32 %v364, 0.0
        %v403 = vmax.f32 %v367, 0.0
        %v404 = vmax.f32 %v372, 0.0
        %v405 = vmax.f32 %v375, 0.0
        %v406 = vmax.f32 %v380, 0.0
        %v407 = vmax.f32 %v383, 0.0
        %v408 = vmax.f32 %v388, 0.0
        %v409 = vmax.f32 %v391, 0.0
        %v410 = vpack.c.bf16 %v395, %v394
        %v411 = vpack.c.bf16 %v397, %v396
        %v412 = vpack.c.bf16 %v399, %v398
        %v413 = vpack.c.bf16 %v401, %v400
        %v414 = vpack.c.bf16 %v403, %v402
        %v415 = vpack.c.bf16 %v405, %v404
        %v416 = vpack.c.bf16 %v407, %v406
        %v417 = vpack.c.bf16 %v409, %v408
        %v418 = vld [vmem:[%s2] sm:$0xf]
        %v419 = vld [vmem:[%s2 + $0x4] sm:$0xf]
        %v420 = vld [vmem:[%s2 + $0x8] sm:$0xf]
        %v421 = vld [vmem:[%s2 + $0xc] sm:$0xf]
        %v422 = vld [vmem:[%s2 + $0x10] sm:$0xf]
        %v423 = vld [vmem:[%s2 + $0x14] sm:$0xf]
        %v424 = vld [vmem:[%s2 + $0x18] sm:$0xf]
        %v425 = vld [vmem:[%s2 + $0x1c] sm:$0xf]
        %v426 = vld [vmem:[%s2 + $0x20] sm:$0xf]
        %v427 = vld [vmem:[%s2 + $0x24] sm:$0xf]
        %v428 = vld [vmem:[%s2 + $0x28] sm:$0xf]
        %v429 = vld [vmem:[%s2 + $0x2c] sm:$0xf]
        %v430 = vld [vmem:[%s2 + $0x30] sm:$0xf]
        %v431 = vld [vmem:[%s2 + $0x34] sm:$0xf]
        %v432 = vld [vmem:[%s2 + $0x38] sm:$0xf]
        %v433 = vld [vmem:[%s2 + $0x3c] sm:$0xf]
        %v434 = vlaneseq
        %v435 = vshrl.u32 %v434, 7
        %v436 = vsub.s32 1, %v435
        %v437 = vrot.slane %v227, %v436
        %v454 = vunpack.c.l.b16 %v418
        %v455 = vunpack.c.l.b16 %v419
        %v456 = vunpack.c.l.b16 %v420
        %v457 = vunpack.c.l.b16 %v421
        %v458 = vunpack.c.l.b16 %v422
        %v459 = vunpack.c.l.b16 %v423
        %v460 = vunpack.c.l.b16 %v424
        %v461 = vunpack.c.l.b16 %v425
        %v462 = vunpack.c.l.b16 %v426
        %v463 = vunpack.c.l.b16 %v427
        %v464 = vunpack.c.l.b16 %v428
        %v465 = vunpack.c.l.b16 %v429
        %v466 = vunpack.c.l.b16 %v430
        %v467 = vunpack.c.l.b16 %v431
        %v468 = vunpack.c.l.b16 %v432
        %v469 = vunpack.c.l.b16 %v433
        %v470 = vpack.c.b16 %v455, %v454
        %v471 = vpack.c.b16 %v457, %v456
        %v472 = vpack.c.b16 %v459, %v458
        %v473 = vpack.c.b16 %v461, %v460
        %v474 = vpack.c.b16 %v463, %v462
        %v475 = vpack.c.b16 %v465, %v464
        %v476 = vpack.c.b16 %v467, %v466
        %v477 = vpack.c.b16 %v469, %v468
        %486 = vmatprep.subr.bf16.mxu0 0
        %487 = vmatpush1.bf16.msra.mxu0 %v477
        %488 = vmatprep.subr.bf16.mxu0 0
        %489 = vmatpush1.bf16.msra.mxu0 %v476
        %490 = vmatprep.subr.bf16.mxu0 0
        %491 = vmatpush1.bf16.msra.mxu0 %v475
        %492 = vmatprep.subr.bf16.mxu0 0
        %493 = vmatpush1.bf16.msra.mxu0 %v474
        %494 = vmatprep.subr.bf16.mxu0 0
        %495 = vmatpush1.bf16.msra.mxu0 %v473
        %496 = vmatprep.subr.bf16.mxu0 0
        %497 = vmatpush1.bf16.msra.mxu0 %v472
        %498 = vmatprep.subr.bf16.mxu0 0
        %499 = vmatpush1.bf16.msra.mxu0 %v471
        %500 = vmatprep.subr.bf16.mxu0 0
        %501 = vmatpush1.bf16.msra.mxu0 %v470
        %502 = vmatprep.subr.bf16.mxu0 0
        %503 = vmatpush2.bf16.msra.mxu0 0
        %504 = vmatprep.subr.bf16.mxu0 0
        %505 = vmatpush2.bf16.msra.mxu0 0
        %506 = vmatprep.subr.bf16.mxu0 0
        %507 = vmatpush2.bf16.msra.mxu0 0
        %508 = vmatprep.subr.bf16.mxu0 0
        %509 = vmatpush2.bf16.msra.mxu0 0
        %510 = vmatprep.subr.bf16.mxu0 0
        %511 = vmatpush2.bf16.msra.mxu0 0
        %512 = vmatprep.subr.bf16.mxu0 0
        %513 = vmatpush2.bf16.msra.mxu0 0
        %514 = vmatprep.subr.bf16.mxu0 0
        %515 = vmatpush2.bf16.msra.mxu0 0
        %516 = vmatprep.subr.bf16.mxu0 0
        %517 = vmatpush2.bf16.msra.mxu0 0
        %518 = vmatprep.mubr.bf16.mxu0 0
        %519 = vmatmul.mubr.bf16.gmra.mxu0 %v410
        %v520 = vpop.f32.mrf.mxu0
        %v521 = vadd.f32 %v437, %v520
        %v522 = vpop.f32.mrf.mxu0
        %v523 = vpop.f32.mrf.mxu0
        %v524 = vadd.f32 %v437, %v523
        %v525 = vpop.f32.mrf.mxu0
        %526 = vmatprep.mubr.bf16.mxu0 0
        %527 = vmatmul.mubr.bf16.gmra.mxu0 %v411
        %v528 = vpop.f32.mrf.mxu0
        %v529 = vadd.f32 %v437, %v528
        %v530 = vpop.f32.mrf.mxu0
        %v531 = vpop.f32.mrf.mxu0
        %v532 = vadd.f32 %v437, %v531
        %v533 = vpop.f32.mrf.mxu0
        %534 = vmatprep.mubr.bf16.mxu0 0
        %535 = vmatmul.mubr.bf16.gmra.mxu0 %v412
        %v536 = vpop.f32.mrf.mxu0
        %v537 = vadd.f32 %v437, %v536
        %v538 = vpop.f32.mrf.mxu0
        %v539 = vpop.f32.mrf.mxu0
        %v540 = vadd.f32 %v437, %v539
        %v541 = vpop.f32.mrf.mxu0
        %542 = vmatprep.mubr.bf16.mxu0 0
        %543 = vmatmul.mubr.bf16.gmra.mxu0 %v413
        %v544 = vpop.f32.mrf.mxu0
        %v545 = vadd.f32 %v437, %v544
        %v546 = vpop.f32.mrf.mxu0
        %v547 = vpop.f32.mrf.mxu0
        %v548 = vadd.f32 %v437, %v547
        %v549 = vpop.f32.mrf.mxu0
        %550 = vmatprep.mubr.bf16.mxu0 0
        %551 = vmatmul.mubr.bf16.gmra.mxu0 %v414
        %v552 = vpop.f32.mrf.mxu0
        %v553 = vadd.f32 %v437, %v552
        %v554 = vpop.f32.mrf.mxu0
        %v555 = vpop.f32.mrf.mxu0
        %v556 = vadd.f32 %v437, %v555
        %v557 = vpop.f32.mrf.mxu0
        %558 = vmatprep.mubr.bf16.mxu0 0
        %559 = vmatmul.mubr.bf16.gmra.mxu0 %v415
        %v560 = vpop.f32.mrf.mxu0
        %v561 = vadd.f32 %v437, %v560
        %v562 = vpop.f32.mrf.mxu0
        %v563 = vpop.f32.mrf.mxu0
        %v564 = vadd.f32 %v437, %v563
        %v565 = vpop.f32.mrf.mxu0
        %566 = vmatprep.mubr.bf16.mxu0 0
        %567 = vmatmul.mubr.bf16.gmra.mxu0 %v416
        %v568 = vpop.f32.mrf.mxu0
        %v569 = vadd.f32 %v437, %v568
        %v570 = vpop.f32.mrf.mxu0
        %v571 = vpop.f32.mrf.mxu0
        %v572 = vadd.f32 %v437, %v571
        %v573 = vpop.f32.mrf.mxu0
        %574 = vmatprep.mubr.bf16.mxu0 0
        %575 = vmatmul.mubr.bf16.gmra.mxu0 %v417
        %v576 = vpop.f32.mrf.mxu0
        %v577 = vadd.f32 %v437, %v576
        %v578 = vpop.f32.mrf.mxu0
        %v579 = vpop.f32.mrf.mxu0
        %v580 = vadd.f32 %v437, %v579
        %v581 = vpop.f32.mrf.mxu0
        %582 = vdwg.mxu0
        %v583 = vmax.f32 %v521, 0.0
        %v584 = vmax.f32 %v524, 0.0
        %v585 = vmax.f32 %v529, 0.0
        %v586 = vmax.f32 %v532, 0.0
        %v587 = vmax.f32 %v537, 0.0
        %v588 = vmax.f32 %v540, 0.0
        %v589 = vmax.f32 %v545, 0.0
        %v590 = vmax.f32 %v548, 0.0
        %v591 = vmax.f32 %v553, 0.0
        %v592 = vmax.f32 %v556, 0.0
        %v593 = vmax.f32 %v561, 0.0
        %v594 = vmax.f32 %v564, 0.0
        %v595 = vmax.f32 %v569, 0.0
        %v596 = vmax.f32 %v572, 0.0
        %v597 = vmax.f32 %v577, 0.0
        %v598 = vmax.f32 %v580, 0.0
        %v599 = vpack.c.bf16 %v584, %v583
        %v600 = vpack.c.bf16 %v586, %v585
        %v601 = vpack.c.bf16 %v588, %v587
        %v602 = vpack.c.bf16 %v590, %v589
        %v603 = vpack.c.bf16 %v592, %v591
        %v604 = vpack.c.bf16 %v594, %v593
        %v605 = vpack.c.bf16 %v596, %v595
        %v606 = vpack.c.bf16 %v598, %v597
        %s607 = scalar_lea.vmem %s2, 64
        %v608 = vld [vmem:[%s607] sm:$0xf]
        %v609 = vld [vmem:[%s607 + $0x4] sm:$0xf]
        %v610 = vld [vmem:[%s607 + $0x8] sm:$0xf]
        %v611 = vld [vmem:[%s607 + $0xc] sm:$0xf]
        %v612 = vld [vmem:[%s607 + $0x10] sm:$0xf]
        %v613 = vld [vmem:[%s607 + $0x14] sm:$0xf]
        %v614 = vld [vmem:[%s607 + $0x18] sm:$0xf]
        %v615 = vld [vmem:[%s607 + $0x1c] sm:$0xf]
        %v616 = vld [vmem:[%s607 + $0x20] sm:$0xf]
        %v617 = vld [vmem:[%s607 + $0x24] sm:$0xf]
        %v618 = vld [vmem:[%s607 + $0x28] sm:$0xf]
        %v619 = vld [vmem:[%s607 + $0x2c] sm:$0xf]
        %v620 = vld [vmem:[%s607 + $0x30] sm:$0xf]
        %v621 = vld [vmem:[%s607 + $0x34] sm:$0xf]
        %v622 = vld [vmem:[%s607 + $0x38] sm:$0xf]
        %v623 = vld [vmem:[%s607 + $0x3c] sm:$0xf]
        %v624 = vlaneseq
        %v625 = vshrl.u32 %v624, 7
        %v626 = vsub.s32 2, %v625
        %v627 = vrot.slane %v227, %v626
        %v644 = vunpack.c.l.b16 %v608
        %v645 = vunpack.c.l.b16 %v609
        %v646 = vunpack.c.l.b16 %v610
        %v647 = vunpack.c.l.b16 %v611
        %v648 = vunpack.c.l.b16 %v612
        %v649 = vunpack.c.l.b16 %v613
        %v650 = vunpack.c.l.b16 %v614
        %v651 = vunpack.c.l.b16 %v615
        %v652 = vunpack.c.l.b16 %v616
        %v653 = vunpack.c.l.b16 %v617
        %v654 = vunpack.c.l.b16 %v618
        %v655 = vunpack.c.l.b16 %v619
        %v656 = vunpack.c.l.b16 %v620
        %v657 = vunpack.c.l.b16 %v621
        %v658 = vunpack.c.l.b16 %v622
        %v659 = vunpack.c.l.b16 %v623
        %v660 = vpack.c.b16 %v645, %v644
        %v661 = vpack.c.b16 %v647, %v646
        %v662 = vpack.c.b16 %v649, %v648
        %v663 = vpack.c.b16 %v651, %v650
        %v664 = vpack.c.b16 %v653, %v652
        %v665 = vpack.c.b16 %v655, %v654
        %v666 = vpack.c.b16 %v657, %v656
        %v667 = vpack.c.b16 %v659, %v658
        %676 = vmatprep.subr.bf16.mxu0 0
        %677 = vmatpush1.bf16.msra.mxu0 %v667
        %678 = vmatprep.subr.bf16.mxu0 0
        %679 = vmatpush1.bf16.msra.mxu0 %v666
        %680 = vmatprep.subr.bf16.mxu0 0
        %681 = vmatpush1.bf16.msra.mxu0 %v665
        %682 = vmatprep.subr.bf16.mxu0 0
        %683 = vmatpush1.bf16.msra.mxu0 %v664
        %684 = vmatprep.subr.bf16.mxu0 0
        %685 = vmatpush1.bf16.msra.mxu0 %v663
        %686 = vmatprep.subr.bf16.mxu0 0
        %687 = vmatpush1.bf16.msra.mxu0 %v662
        %688 = vmatprep.subr.bf16.mxu0 0
        %689 = vmatpush1.bf16.msra.mxu0 %v661
        %690 = vmatprep.subr.bf16.mxu0 0
        %691 = vmatpush1.bf16.msra.mxu0 %v660
        %692 = vmatprep.subr.bf16.mxu0 0
        %693 = vmatpush2.bf16.msra.mxu0 0
        %694 = vmatprep.subr.bf16.mxu0 0
        %695 = vmatpush2.bf16.msra.mxu0 0
        %696 = vmatprep.subr.bf16.mxu0 0
        %697 = vmatpush2.bf16.msra.mxu0 0
        %698 = vmatprep.subr.bf16.mxu0 0
        %699 = vmatpush2.bf16.msra.mxu0 0
        %700 = vmatprep.subr.bf16.mxu0 0
        %701 = vmatpush2.bf16.msra.mxu0 0
        %702 = vmatprep.subr.bf16.mxu0 0
        %703 = vmatpush2.bf16.msra.mxu0 0
        %704 = vmatprep.subr.bf16.mxu0 0
        %705 = vmatpush2.bf16.msra.mxu0 0
        %706 = vmatprep.subr.bf16.mxu0 0
        %707 = vmatpush2.bf16.msra.mxu0 0
        %708 = vmatprep.mubr.bf16.mxu0 0
        %709 = vmatmul.mubr.bf16.gmra.mxu0 %v599
        %v710 = vpop.f32.mrf.mxu0
        %v711 = vadd.f32 %v627, %v710
        %v712 = vpop.f32.mrf.mxu0
        %v713 = vpop.f32.mrf.mxu0
        %v714 = vadd.f32 %v627, %v713
        %v715 = vpop.f32.mrf.mxu0
        %716 = vmatprep.mubr.bf16.mxu0 0
        %717 = vmatmul.mubr.bf16.gmra.mxu0 %v600
        %v718 = vpop.f32.mrf.mxu0
        %v719 = vadd.f32 %v627, %v718
        %v720 = vpop.f32.mrf.mxu0
        %v721 = vpop.f32.mrf.mxu0
        %v722 = vadd.f32 %v627, %v721
        %v723 = vpop.f32.mrf.mxu0
        %724 = vmatprep.mubr.bf16.mxu0 0
        %725 = vmatmul.mubr.bf16.gmra.mxu0 %v601
        %v726 = vpop.f32.mrf.mxu0
        %v727 = vadd.f32 %v627, %v726
        %v728 = vpop.f32.mrf.mxu0
        %v729 = vpop.f32.mrf.mxu0
        %v730 = vadd.f32 %v627, %v729
        %v731 = vpop.f32.mrf.mxu0
        %732 = vmatprep.mubr.bf16.mxu0 0
        %733 = vmatmul.mubr.bf16.gmra.mxu0 %v602
        %v734 = vpop.f32.mrf.mxu0
        %v735 = vadd.f32 %v627, %v734
        %v736 = vpop.f32.mrf.mxu0
        %v737 = vpop.f32.mrf.mxu0
        %v738 = vadd.f32 %v627, %v737
        %v739 = vpop.f32.mrf.mxu0
        %740 = vmatprep.mubr.bf16.mxu0 0
        %741 = vmatmul.mubr.bf16.gmra.mxu0 %v603
        %v742 = vpop.f32.mrf.mxu0
        %v743 = vadd.f32 %v627, %v742
        %v744 = vpop.f32.mrf.mxu0
        %v745 = vpop.f32.mrf.mxu0
        %v746 = vadd.f32 %v627, %v745
        %v747 = vpop.f32.mrf.mxu0
        %748 = vmatprep.mubr.bf16.mxu0 0
        %749 = vmatmul.mubr.bf16.gmra.mxu0 %v604
        %v750 = vpop.f32.mrf.mxu0
        %v751 = vadd.f32 %v627, %v750
        %v752 = vpop.f32.mrf.mxu0
        %v753 = vpop.f32.mrf.mxu0
        %v754 = vadd.f32 %v627, %v753
        %v755 = vpop.f32.mrf.mxu0
        %756 = vmatprep.mubr.bf16.mxu0 0
        %757 = vmatmul.mubr.bf16.gmra.mxu0 %v605
        %v758 = vpop.f32.mrf.mxu0
        %v759 = vadd.f32 %v627, %v758
        %v760 = vpop.f32.mrf.mxu0
        %v761 = vpop.f32.mrf.mxu0
        %v762 = vadd.f32 %v627, %v761
        %v763 = vpop.f32.mrf.mxu0
        %764 = vmatprep.mubr.bf16.mxu0 0
        %765 = vmatmul.mubr.bf16.gmra.mxu0 %v606
        %v766 = vpop.f32.mrf.mxu0
        %v767 = vadd.f32 %v627, %v766
        %v768 = vpop.f32.mrf.mxu0
        %v769 = vpop.f32.mrf.mxu0
        %v770 = vadd.f32 %v627, %v769
        %v771 = vpop.f32.mrf.mxu0
        %772 = vdwg.mxu0
        %v773 = vmax.f32 %v711, 0.0
        %v774 = vmax.f32 %v714, 0.0
        %v775 = vmax.f32 %v719, 0.0
        %v776 = vmax.f32 %v722, 0.0
        %v777 = vmax.f32 %v727, 0.0
        %v778 = vmax.f32 %v730, 0.0
        %v779 = vmax.f32 %v735, 0.0
        %v780 = vmax.f32 %v738, 0.0
        %v781 = vmax.f32 %v743, 0.0
        %v782 = vmax.f32 %v746, 0.0
        %v783 = vmax.f32 %v751, 0.0
        %v784 = vmax.f32 %v754, 0.0
        %v785 = vmax.f32 %v759, 0.0
        %v786 = vmax.f32 %v762, 0.0
        %v787 = vmax.f32 %v767, 0.0
        %v788 = vmax.f32 %v770, 0.0
        %v789 = vpack.c.bf16 %v774, %v773
        %v790 = vpack.c.bf16 %v776, %v775
        %v791 = vpack.c.bf16 %v778, %v777
        %v792 = vpack.c.bf16 %v780, %v779
        %v793 = vpack.c.bf16 %v782, %v781
        %v794 = vpack.c.bf16 %v784, %v783
        %v795 = vpack.c.bf16 %v786, %v785
        %v796 = vpack.c.bf16 %v788, %v787
        %v797 = vld [vmem:[%s3] sm:$0xf]
        %v798 = vld [vmem:[%s3 + $0x4] sm:$0xf]
        %v799 = vld [vmem:[%s3 + $0x8] sm:$0xf]
        %v800 = vld [vmem:[%s3 + $0xc] sm:$0xf]
        %v801 = vld [vmem:[%s3 + $0x10] sm:$0xf]
        %v802 = vld [vmem:[%s3 + $0x14] sm:$0xf]
        %v803 = vld [vmem:[%s3 + $0x18] sm:$0xf]
        %v804 = vld [vmem:[%s3 + $0x1c] sm:$0xf]
        %v805 = vld [vmem:[%s3 + $0x20] sm:$0xf]
        %v806 = vld [vmem:[%s3 + $0x24] sm:$0xf]
        %v807 = vld [vmem:[%s3 + $0x28] sm:$0xf]
        %v808 = vld [vmem:[%s3 + $0x2c] sm:$0xf]
        %v809 = vld [vmem:[%s3 + $0x30] sm:$0xf]
        %v810 = vld [vmem:[%s3 + $0x34] sm:$0xf]
        %v811 = vld [vmem:[%s3 + $0x38] sm:$0xf]
        %v812 = vld [vmem:[%s3 + $0x3c] sm:$0xf]
        %v813 = vlaneseq
        %v814 = vshrl.u32 %v813, 7
        %v815 = vsub.s32 3, %v814
        %v816 = vrot.slane %v227, %v815
        %v833 = vunpack.c.l.b16 %v797
        %v834 = vunpack.c.l.b16 %v798
        %v835 = vunpack.c.l.b16 %v799
        %v836 = vunpack.c.l.b16 %v800
        %v837 = vunpack.c.l.b16 %v801
        %v838 = vunpack.c.l.b16 %v802
        %v839 = vunpack.c.l.b16 %v803
        %v840 = vunpack.c.l.b16 %v804
        %v841 = vunpack.c.l.b16 %v805
        %v842 = vunpack.c.l.b16 %v806
        %v843 = vunpack.c.l.b16 %v807
        %v844 = vunpack.c.l.b16 %v808
        %v845 = vunpack.c.l.b16 %v809
        %v846 = vunpack.c.l.b16 %v810
        %v847 = vunpack.c.l.b16 %v811
        %v848 = vunpack.c.l.b16 %v812
        %v849 = vpack.c.b16 %v834, %v833
        %v850 = vpack.c.b16 %v836, %v835
        %v851 = vpack.c.b16 %v838, %v837
        %v852 = vpack.c.b16 %v840, %v839
        %v853 = vpack.c.b16 %v842, %v841
        %v854 = vpack.c.b16 %v844, %v843
        %v855 = vpack.c.b16 %v846, %v845
        %v856 = vpack.c.b16 %v848, %v847
        %865 = vmatprep.subr.bf16.mxu0 0
        %866 = vmatpush1.bf16.msra.mxu0 %v856
        %867 = vmatprep.subr.bf16.mxu0 0
        %868 = vmatpush1.bf16.msra.mxu0 %v855
        %869 = vmatprep.subr.bf16.mxu0 0
        %870 = vmatpush1.bf16.msra.mxu0 %v854
        %871 = vmatprep.subr.bf16.mxu0 0
        %872 = vmatpush1.bf16.msra.mxu0 %v853
        %873 = vmatprep.subr.bf16.mxu0 0
        %874 = vmatpush1.bf16.msra.mxu0 %v852
        %875 = vmatprep.subr.bf16.mxu0 0
        %876 = vmatpush1.bf16.msra.mxu0 %v851
        %877 = vmatprep.subr.bf16.mxu0 0
        %878 = vmatpush1.bf16.msra.mxu0 %v850
        %879 = vmatprep.subr.bf16.mxu0 0
        %880 = vmatpush1.bf16.msra.mxu0 %v849
        %881 = vmatprep.subr.bf16.mxu0 0
        %882 = vmatpush2.bf16.msra.mxu0 0
        %883 = vmatprep.subr.bf16.mxu0 0
        %884 = vmatpush2.bf16.msra.mxu0 0
        %885 = vmatprep.subr.bf16.mxu0 0
        %886 = vmatpush2.bf16.msra.mxu0 0
        %887 = vmatprep.subr.bf16.mxu0 0
        %888 = vmatpush2.bf16.msra.mxu0 0
        %889 = vmatprep.subr.bf16.mxu0 0
        %890 = vmatpush2.bf16.msra.mxu0 0
        %891 = vmatprep.subr.bf16.mxu0 0
        %892 = vmatpush2.bf16.msra.mxu0 0
        %893 = vmatprep.subr.bf16.mxu0 0
        %894 = vmatpush2.bf16.msra.mxu0 0
        %895 = vmatprep.subr.bf16.mxu0 0
        %896 = vmatpush2.bf16.msra.mxu0 0
        %897 = vmatprep.mubr.bf16.mxu0 0
        %898 = vmatmul.mubr.bf16.gmra.mxu0 %v789
        %v899 = vpop.f32.mrf.mxu0
        %v900 = vadd.f32 %v816, %v899
        %v901 = vpop.f32.mrf.mxu0
        %v902 = vpop.f32.mrf.mxu0
        %v903 = vadd.f32 %v816, %v902
        %v904 = vpop.f32.mrf.mxu0
        %905 = vmatprep.mubr.bf16.mxu0 0
        %906 = vmatmul.mubr.bf16.gmra.mxu0 %v790
        %v907 = vpop.f32.mrf.mxu0
        %v908 = vadd.f32 %v816, %v907
        %v909 = vpop.f32.mrf.mxu0
        %v910 = vpop.f32.mrf.mxu0
        %v911 = vadd.f32 %v816, %v910
        %v912 = vpop.f32.mrf.mxu0
        %913 = vmatprep.mubr.bf16.mxu0 0
        %914 = vmatmul.mubr.bf16.gmra.mxu0 %v791
        %v915 = vpop.f32.mrf.mxu0
        %v916 = vadd.f32 %v816, %v915
        %v917 = vpop.f32.mrf.mxu0
        %v918 = vpop.f32.mrf.mxu0
        %v919 = vadd.f32 %v816, %v918
        %v920 = vpop.f32.mrf.mxu0
        %921 = vmatprep.mubr.bf16.mxu0 0
        %922 = vmatmul.mubr.bf16.gmra.mxu0 %v792
        %v923 = vpop.f32.mrf.mxu0
        %v924 = vadd.f32 %v816, %v923
        %v925 = vpop.f32.mrf.mxu0
        %v926 = vpop.f32.mrf.mxu0
        %v927 = vadd.f32 %v816, %v926
        %v928 = vpop.f32.mrf.mxu0
        %929 = vmatprep.mubr.bf16.mxu0 0
        %930 = vmatmul.mubr.bf16.gmra.mxu0 %v793
        %v931 = vpop.f32.mrf.mxu0
        %v932 = vadd.f32 %v816, %v931
        %v933 = vpop.f32.mrf.mxu0
        %v934 = vpop.f32.mrf.mxu0
        %v935 = vadd.f32 %v816, %v934
        %v936 = vpop.f32.mrf.mxu0
        %937 = vmatprep.mubr.bf16.mxu0 0
        %938 = vmatmul.mubr.bf16.gmra.mxu0 %v794
        %v939 = vpop.f32.mrf.mxu0
        %v940 = vadd.f32 %v816, %v939
        %v941 = vpop.f32.mrf.mxu0
        %v942 = vpop.f32.mrf.mxu0
        %v943 = vadd.f32 %v816, %v942
        %v944 = vpop.f32.mrf.mxu0
        %945 = vmatprep.mubr.bf16.mxu0 0
        %946 = vmatmul.mubr.bf16.gmra.mxu0 %v795
        %v947 = vpop.f32.mrf.mxu0
        %v948 = vadd.f32 %v816, %v947
        %v949 = vpop.f32.mrf.mxu0
        %v950 = vpop.f32.mrf.mxu0
        %v951 = vadd.f32 %v816, %v950
        %v952 = vpop.f32.mrf.mxu0
        %953 = vmatprep.mubr.bf16.mxu0 0
        %954 = vmatmul.mubr.bf16.gmra.mxu0 %v796
        %v955 = vpop.f32.mrf.mxu0
        %v956 = vadd.f32 %v816, %v955
        %v957 = vpop.f32.mrf.mxu0
        %v958 = vpop.f32.mrf.mxu0
        %v959 = vadd.f32 %v816, %v958
        %v960 = vpop.f32.mrf.mxu0
        %961 = vdwg.mxu0
        %v962 = vpack.c.bf16 %v903, %v900
        %v963 = vpack.c.bf16 %v911, %v908
        %v964 = vpack.c.bf16 %v919, %v916
        %v965 = vpack.c.bf16 %v927, %v924
        %v966 = vpack.c.bf16 %v935, %v932
        %v967 = vpack.c.bf16 %v943, %v940
        %v968 = vpack.c.bf16 %v951, %v948
        %v969 = vpack.c.bf16 %v959, %v956
        %v978 = vunpack.c.l.b16 %v962
        %v979 = vunpack.c.h.b16 %v962
        %v980 = vunpack.c.l.b16 %v963
        %v981 = vunpack.c.h.b16 %v963
        %v982 = vunpack.c.l.b16 %v964
        %v983 = vunpack.c.h.b16 %v964
        %v984 = vunpack.c.l.b16 %v965
        %v985 = vunpack.c.h.b16 %v965
        %v986 = vunpack.c.l.b16 %v966
        %v987 = vunpack.c.h.b16 %v966
        %v988 = vunpack.c.l.b16 %v967
        %v989 = vunpack.c.h.b16 %v967
        %v990 = vunpack.c.l.b16 %v968
        %v991 = vunpack.c.h.b16 %v968
        %v992 = vunpack.c.l.b16 %v969
        %v993 = vunpack.c.h.b16 %v969
        %v994 = vpack.c.b16 %v978, %v978
        %v995 = vpack.c.b16 %v979, %v979
        %v996 = vpack.c.b16 %v980, %v980
        %v997 = vpack.c.b16 %v981, %v981
        %v998 = vpack.c.b16 %v982, %v982
        %v999 = vpack.c.b16 %v983, %v983
        %v1000 = vpack.c.b16 %v984, %v984
        %v1001 = vpack.c.b16 %v985, %v985
        %v1002 = vpack.c.b16 %v986, %v986
        %v1003 = vpack.c.b16 %v987, %v987
        %v1004 = vpack.c.b16 %v988, %v988
        %v1005 = vpack.c.b16 %v989, %v989
        %v1006 = vpack.c.b16 %v990, %v990
        %v1007 = vpack.c.b16 %v991, %v991
        %v1008 = vpack.c.b16 %v992, %v992
        %v1009 = vpack.c.b16 %v993, %v993
        %1026 = vst [vmem:[%s218] sm:$0xf] %v994
        %1027 = vst [vmem:[%s218 + $0x4] sm:$0xf] %v995
        %1028 = vst [vmem:[%s218 + $0x8] sm:$0xf] %v996
        %1029 = vst [vmem:[%s218 + $0xc] sm:$0xf] %v997
        %1030 = vst [vmem:[%s218 + $0x10] sm:$0xf] %v998
        %1031 = vst [vmem:[%s218 + $0x14] sm:$0xf] %v999
        %1032 = vst [vmem:[%s218 + $0x18] sm:$0xf] %v1000
        %1033 = vst [vmem:[%s218 + $0x1c] sm:$0xf] %v1001
        %1034 = vst [vmem:[%s218 + $0x20] sm:$0xf] %v1002
        %1035 = vst [vmem:[%s218 + $0x24] sm:$0xf] %v1003
        %1036 = vst [vmem:[%s218 + $0x28] sm:$0xf] %v1004
        %1037 = vst [vmem:[%s218 + $0x2c] sm:$0xf] %v1005
        %1038 = vst [vmem:[%s218 + $0x30] sm:$0xf] %v1006
        %1039 = vst [vmem:[%s218 + $0x34] sm:$0xf] %v1007
        %1040 = vst [vmem:[%s218 + $0x38] sm:$0xf] %v1008
        %1041 = vst [vmem:[%s218 + $0x3c] sm:$0xf] %v1009
        %s1042 = sand.u32 %s137, 1
        %s1043 = scalar_lea.sflag [#allocation3], %s1042
        %s1044 = sand.u32 %s137, 1
        %s1045 = smul.addr %s1044, 64
        %s1046 = scalar_lea.vmem [#allocation2], %s1045
        // Predicated region
        $region41: #{tpu_custom_call.1} parent=39 // pred_check
          %p1047 = pneg %p147
        $region42: #{tpu_custom_call.1} parent=39 // pred_check_branch
          %1049 = sbr.rel (%p1047) target = $region44
        $region43: #{tpu_custom_call.1} parent=39 // pred_region
          %s1050 = smul.u32 16, %s19
          %s1052 = ssub.s32 1024, 1024
          %1053 = vsyncadd %s1043, %s1052
          %s1054 = smul.addr %s1050, 64
          %s1055 = scalar_lea.hbm %s5, %s1054
          %s1056 = sshll.u32 %s1046, 4
          %s1057 = int_to_ptr.vmem [resolvable:$true] %s1056
          %1062 = dma.vmem_to_hbm [thread:$0]  %s1057, 1024, %s1055, %s1043, 64, 64, 4
        $region44: #{tpu_custom_call.1} parent=39 // pred_fallthru
          _
      $region40: #{tpu_custom_call.1} parent=5 // pred_fallthru
        _
      %p1063 = scmp.le.s32.totalorder 2, %s14
      // Predicated region
      $region45: #{tpu_custom_call.1} parent=5 // pred_check
        %p1064 = pneg %p1063
      $region46: #{tpu_custom_call.1} parent=5 // pred_check_branch
        %1066 = sbr.rel (%p1064) target = $region48
      $region47: #{tpu_custom_call.1} parent=5 // pred_region
        %s1067 = ssub.s32 %s14, 2
        // Predicated region
        $region49: #{tpu_custom_call.1} parent=47 // pred_check
          %p1068 = pneg %p153
        $region50: #{tpu_custom_call.1} parent=47 // pred_check_branch
          %1070 = sbr.rel (%p1068) target = $region52
        $region51: #{tpu_custom_call.1} parent=47 // pred_region
          %s1071 = sand.u32 %s138, 1
          %s1072 = scalar_lea.sflag [#allocation3], %s1071
          %s1073 = sand.u32 %s138, 1
          %s1074 = smul.addr %s1073, 64
          %s1075 = scalar_lea.vmem [#allocation2], %s1074
          %1076 = dma.done %s1072, 1024
        $region52: #{tpu_custom_call.1} parent=47 // pred_fallthru
          _
      $region48: #{tpu_custom_call.1} parent=5 // pred_fallthru
        _
    $region6: #{tpu_custom_call.1} parent=1 // loop_footer
      %s18 = sadd.s32 1, %s14
    $region7: #{tpu_custom_call.1} parent=1 // loop_footer_branch
      %13 = sbr.rel target = $region3
    $region8: #{tpu_custom_call.1} parent=1 // loop_exit
      _
    %1077 = vsyncpa [#allocation3], 1
    %s1078 = scalar_lea.sflag [#allocation3], 1
    %1079 = vsyncpa %s1078, 1

</llo_original>
